<compile_context>
chip_gen: v5e
topology: v5e:2x2
jax: 0.10.0
libtpu: 0.0.40
codegen_flags: <defaults>
</compile_context>

<pallas_src>
import functools

import jax
import jax.numpy as jnp
from jax.experimental import pallas as pl
from jax.experimental.pallas import tpu as pltpu

# cfg constants (standard VoxelNet config) -- synthetic, defined in-script.
CFG_ALPHA = 1.5
CFG_BETA = 1.0
CFG_EPS = 1e-6

_LANES = 128
_MAX_BLOCK_LANES = 16384               # cap on the lane-tile width
_VMEM_INPUT_BUDGET = 6 * 1024 * 1024   # budget for double-buffered input blocks


def _voxel_loss_kernel(psm_ref, pos_ref, neg_ref, rm_ref, tgt_ref, out_ref,
                       *, eps, hw_total, hw_blk, need_mask):
    f32 = jnp.float32
    # Per-block upcast (inputs may arrive as bf16/f32); accumulate in f32.
    psm = psm_ref[...].astype(f32)       # (BA, hw_blk)
    pos = pos_ref[...].astype(f32)       # (BA, hw_blk)
    neg = neg_ref[...].astype(f32)       # (BA, hw_blk)
    rm = rm_ref[...].astype(f32)         # (BA, 7, hw_blk)
    tgt = tgt_ref[...].astype(f32)       # (BA, 7, hw_blk)

    # Classification branch (eps form kept for parity with the reference).
    p = jax.nn.sigmoid(psm)
    cls_pos = -pos * jnp.log(p + eps)
    cls_neg = -neg * jnp.log(1.0 - p + eps)

    # Regression branch: SmoothL1(reduction='sum') on (rm - tgt) * pos.
    # pos is a {0,1} mask -> SmoothL1((rm-tgt)*pos) == pos * SmoothL1(rm-tgt),
    # which avoids broadcasting the mask over the 7 box components.
    d = rm - tgt
    ad = jnp.abs(d)
    sl1 = jnp.where(ad < 1.0, 0.5 * d * d, ad - 0.5)    # (BA, 7, hw_blk)
    reg = pos * jnp.sum(sl1, axis=1)                    # (BA, hw_blk)

    if need_mask:
        # Last lane-tile reads past HW: out-of-bounds lanes hold unspecified
        # data, so select them to zero (where, not multiply, so NaN garbage
        # cannot leak into the sums).
        rem = hw_total - pl.program_id(0) * hw_blk
        lane = jax.lax.broadcasted_iota(jnp.int32, psm.shape, 1)
        valid = lane < rem
        zero = jnp.zeros_like(psm)
        pos = jnp.where(valid, pos, zero)
        neg = jnp.where(valid, neg, zero)
        cls_pos = jnp.where(valid, cls_pos, zero)
        cls_neg = jnp.where(valid, cls_neg, zero)
        reg = jnp.where(valid, reg, zero)

    def bcast_row(s):
        return jnp.full((1, _LANES), s, dtype=f32)

    # Per-grid-step partial sums written to this step's own (5, 128) slab
    # (no resident accumulator -> grid axis can be "parallel" / megacore).
    out_ref[0] = jnp.concatenate(
        [bcast_row(jnp.sum(cls_pos)),
         bcast_row(jnp.sum(cls_neg)),
         bcast_row(jnp.sum(pos)),
         bcast_row(jnp.sum(neg)),
         bcast_row(jnp.sum(reg))],
        axis=0)


@jax.jit
def voxel_loss(psm, rm, pos_equal_one, neg_equal_one, targets):
    """Pallas implementation of VoxelLoss.forward. Returns (conf_loss, reg_loss)."""
    B, A, H, W = psm.shape
    BA, HW = B * A, H * W

    # Layout plumbing only (no math, no pads):
    #   * psm / rm: pure reshapes (NCHW-natural (b, a, h, w) anchor order;
    #     rm channel c = 7a + j, so (B,7A,H,W) -> (BA,7,HW) is free),
    #   * pos/neg: cheap (N,)-sized transposes,
    #   * targets: the single big transpose, to match rm's layout.
    psm2 = psm.reshape(BA, HW)                                        # (BA, HW)
    pos2 = jnp.transpose(pos_equal_one, (0, 3, 1, 2)).reshape(BA, HW)
    neg2 = jnp.transpose(neg_equal_one, (0, 3, 1, 2)).reshape(BA, HW)
    rm3 = rm.reshape(BA, 7, HW)                                       # free
    tgt3 = jnp.transpose(targets.reshape(B, H, W, A, 7),
                         (0, 3, 4, 1, 2)).reshape(BA, 7, HW)

    # Lane-tile width from a VMEM budget (double-buffered input blocks;
    # conservative f32 itemsize, sublane padding BA->mult-of-8 and 7->8).
    ba_pad = ((BA + 7) // 8) * 8
    bytes_per_lane = 4 * (3 * ba_pad + 2 * 8 * BA)
    hw_blk = _VMEM_INPUT_BUDGET // (2 * bytes_per_lane)
    hw_blk = max(_LANES, (hw_blk // _LANES) * _LANES)
    hw_blk = min(hw_blk, _MAX_BLOCK_LANES)
    if hw_blk >= HW:
        hw_blk = HW                    # full-extent block: always legal
    n_t = (HW + hw_blk - 1) // hw_blk
    need_mask = (HW % hw_blk) != 0

    kernel = functools.partial(_voxel_loss_kernel, eps=CFG_EPS, hw_total=HW,
                               hw_blk=hw_blk, need_mask=need_mask)

    n_anchor = BA * HW
    in_bytes = sum(int(x.size) * x.dtype.itemsize
                   for x in (psm2, pos2, neg2, rm3, tgt3))
    cost = pl.CostEstimate(
        flops=int(70 * n_anchor),
        transcendentals=int(4 * n_anchor),
        bytes_accessed=int(in_bytes + n_t * 5 * _LANES * 4),
    )

    sums = pl.pallas_call(
        kernel,
        grid=(n_t,),
        in_specs=[
            pl.BlockSpec((BA, hw_blk), lambda t: (0, t)),
            pl.BlockSpec((BA, hw_blk), lambda t: (0, t)),
            pl.BlockSpec((BA, hw_blk), lambda t: (0, t)),
            pl.BlockSpec((BA, 7, hw_blk), lambda t: (0, 0, t)),
            pl.BlockSpec((BA, 7, hw_blk), lambda t: (0, 0, t)),
        ],
        out_specs=pl.BlockSpec((1, 5, _LANES), lambda t: (t, 0, 0)),
        out_shape=jax.ShapeDtypeStruct((n_t, 5, _LANES), jnp.float32),
        compiler_params=pltpu.CompilerParams(
            dimension_semantics=("parallel",),
            vmem_limit_bytes=32 * 1024 * 1024),
        cost_estimate=cost,
    )(psm2, pos2, neg2, rm3, tgt3)

    # Tiny final reduce over the per-tile partial-sum slabs + scalar combine.
    totals = jnp.sum(sums[:, :, 0], axis=0)        # (5,)
    cls_pos_sum, cls_neg_sum = totals[0], totals[1]
    pos_sum, neg_sum, sl1_sum = totals[2], totals[3], totals[4]

    cls_pos_loss = cls_pos_sum / (pos_sum + CFG_EPS)
    cls_neg_loss = cls_neg_sum / (neg_sum + CFG_EPS)
    reg_loss = sl1_sum / (pos_sum + CFG_EPS)
    conf_loss = CFG_ALPHA * cls_pos_loss + CFG_BETA * cls_neg_loss
    return conf_loss, reg_loss


def voxel_loss_ref(psm, rm, pos_equal_one, neg_equal_one, targets):
    """Pure-JAX reference mirroring the PyTorch module exactly."""
    p_pos = jax.nn.sigmoid(jnp.transpose(psm, (0, 2, 3, 1)))
    rm_p = jnp.transpose(rm, (0, 2, 3, 1))
    B, H, W, C = rm_p.shape
    rm_p = rm_p.reshape(B, H, W, -1, 7)
    tgt = targets.reshape(B, H, W, -1, 7)
    pos_reg = jnp.broadcast_to(pos_equal_one[..., None], pos_equal_one.shape + (7,))
    rm_pos = rm_p * pos_reg
    tgt_pos = tgt * pos_reg
    cls_pos = jnp.sum(-pos_equal_one * jnp.log(p_pos + CFG_EPS)) / (
        jnp.sum(pos_equal_one) + CFG_EPS)
    cls_neg = jnp.sum(-neg_equal_one * jnp.log(1.0 - p_pos + CFG_EPS)) / (
        jnp.sum(neg_equal_one) + CFG_EPS)
    d = rm_pos - tgt_pos
    ad = jnp.abs(d)
    sl1 = jnp.sum(jnp.where(ad < 1.0, 0.5 * d * d, ad - 0.5))
    reg = sl1 / (jnp.sum(pos_equal_one) + CFG_EPS)
    conf = CFG_ALPHA * cls_pos + CFG_BETA * cls_neg
    return conf, reg


if __name__ == "__main__":
    key = jax.random.PRNGKey(0)
    k1, k2, k3, k4, k5 = jax.random.split(key, 5)

    B, A, H, W = 2, 2, 16, 16  # batch, anchors/loc, spatial
    psm = jax.random.normal(k1, (B, A, H, W), dtype=jnp.float32)
    rm = jax.random.normal(k2, (B, 7 * A, H, W), dtype=jnp.float32)
    pos_equal_one = (jax.random.uniform(k3, (B, H, W, A)) < 0.1).astype(jnp.float32)
    neg_equal_one = ((jax.random.uniform(k4, (B, H, W, A)) < 0.7).astype(jnp.float32)
                     * (1.0 - pos_equal_one))
    targets = jax.random.normal(k5, (B, H, W, 7 * A), dtype=jnp.float32)

    conf_loss, reg_loss = voxel_loss(psm, rm, pos_equal_one, neg_equal_one, targets)
    jax.block_until_ready((conf_loss, reg_loss))

    conf_ref, reg_ref = voxel_loss_ref(psm, rm, pos_equal_one, neg_equal_one, targets)
    assert jnp.allclose(conf_loss, conf_ref, rtol=1e-5, atol=1e-5), (conf_loss, conf_ref)
    assert jnp.allclose(reg_loss, reg_ref, rtol=1e-5, atol=1e-5), (reg_loss, reg_ref)

    print("KERNEL_OK")
</pallas_src>

<mosaic_0001>
module attributes {stable_mosaic.version = 11 : i64} {
  func.func @_voxel_loss_kernel(%arg0: i32, %arg1: memref<4x256xf32, #tpu.memory_space<vmem>>, %arg2: memref<4x256xf32, #tpu.memory_space<vmem>>, %arg3: memref<4x256xf32, #tpu.memory_space<vmem>>, %arg4: memref<4x7x256xf32, #tpu.memory_space<vmem>>, %arg5: memref<4x7x256xf32, #tpu.memory_space<vmem>>, %arg6: memref<1x5x128xf32, #tpu.memory_space<vmem>>) attributes {dimension_semantics = [#tpu.dimension_semantics<parallel>], iteration_bounds = array<i64: 1>, scalar_prefetch = 0 : i64, scratch_operands = 0 : i64, tpu.core_type = #tpu.core_type<tc>, window_params = [{transform_indices = @transform_0, window_bounds = array<i64: 4, 256>}, {transform_indices = @transform_1, window_bounds = array<i64: 4, 256>}, {transform_indices = @transform_2, window_bounds = array<i64: 4, 256>}, {transform_indices = @transform_3, window_bounds = array<i64: 4, 7, 256>}, {transform_indices = @transform_4, window_bounds = array<i64: 4, 7, 256>}, {transform_indices = @transform_5, window_bounds = array<i64: 1, 5, 128>}]} {
    %c0 = arith.constant 0 : index
    %c0_0 = arith.constant 0 : index
    %0 = vector.load %arg1[%c0, %c0_0] : memref<4x256xf32, #tpu.memory_space<vmem>>, vector<4x256xf32>
    %c0_1 = arith.constant 0 : index
    %c0_2 = arith.constant 0 : index
    %1 = vector.load %arg2[%c0_1, %c0_2] : memref<4x256xf32, #tpu.memory_space<vmem>>, vector<4x256xf32>
    %c0_3 = arith.constant 0 : index
    %c0_4 = arith.constant 0 : index
    %2 = vector.load %arg3[%c0_3, %c0_4] : memref<4x256xf32, #tpu.memory_space<vmem>>, vector<4x256xf32>
    %c0_5 = arith.constant 0 : index
    %c0_6 = arith.constant 0 : index
    %c0_7 = arith.constant 0 : index
    %3 = vector.load %arg4[%c0_5, %c0_6, %c0_7] : memref<4x7x256xf32, #tpu.memory_space<vmem>>, vector<4x7x256xf32>
    %c0_8 = arith.constant 0 : index
    %c0_9 = arith.constant 0 : index
    %c0_10 = arith.constant 0 : index
    %4 = vector.load %arg5[%c0_8, %c0_9, %c0_10] : memref<4x7x256xf32, #tpu.memory_space<vmem>>, vector<4x7x256xf32>
    %5 = arith.negf %0 : vector<4x256xf32>
    %6 = math.exp %5 : vector<4x256xf32>
    %cst = arith.constant 1.000000e+00 : f32
    %7 = vector.broadcast %cst : f32 to vector<4x256xf32>
    %8 = arith.addf %7, %6 : vector<4x256xf32>
    %9 = arith.divf %7, %8 : vector<4x256xf32>
    %cst_11 = arith.constant 0.000000e+00 : f32
    %10 = vector.broadcast %cst_11 : f32 to vector<4x256xf32>
    %11 = arith.subf %10, %1 : vector<4x256xf32>
    %cst_12 = arith.constant 9.99999997E-7 : f32
    %12 = vector.broadcast %cst_12 : f32 to vector<4x256xf32>
    %13 = arith.addf %9, %12 : vector<4x256xf32>
    %14 = math.log %13 : vector<4x256xf32>
    %15 = arith.mulf %11, %14 : vector<4x256xf32>
    %cst_13 = arith.constant 0.000000e+00 : f32
    %16 = vector.broadcast %cst_13 : f32 to vector<4x256xf32>
    %17 = arith.subf %16, %2 : vector<4x256xf32>
    %cst_14 = arith.constant 1.000000e+00 : f32
    %18 = vector.broadcast %cst_14 : f32 to vector<4x256xf32>
    %19 = arith.subf %18, %9 : vector<4x256xf32>
    %cst_15 = arith.constant 9.99999997E-7 : f32
    %20 = vector.broadcast %cst_15 : f32 to vector<4x256xf32>
    %21 = arith.addf %19, %20 : vector<4x256xf32>
    %22 = math.log %21 : vector<4x256xf32>
    %23 = arith.mulf %17, %22 : vector<4x256xf32>
    %24 = arith.subf %3, %4 : vector<4x7x256xf32>
    %25 = math.absf %24 : vector<4x7x256xf32>
    %cst_16 = arith.constant 1.000000e+00 : f32
    %26 = vector.broadcast %cst_16 : f32 to vector<4x7x256xf32>
    %27 = arith.cmpf olt, %25, %26 : vector<4x7x256xf32>
    %cst_17 = arith.constant 5.000000e-01 : f32
    %28 = vector.broadcast %cst_17 : f32 to vector<4x7x256xf32>
    %29 = arith.mulf %28, %24 : vector<4x7x256xf32>
    %30 = arith.mulf %29, %24 : vector<4x7x256xf32>
    %cst_18 = arith.constant 5.000000e-01 : f32
    %31 = vector.broadcast %cst_18 : f32 to vector<4x7x256xf32>
    %32 = arith.subf %25, %31 : vector<4x7x256xf32>
    %33 = arith.select %27, %30, %32 : vector<4x7x256xi1>, vector<4x7x256xf32>
    %cst_19 = arith.constant dense<0.000000e+00> : vector<4x256xf32>
    %34 = vector.multi_reduction <add>, %33, %cst_19 [1] : vector<4x7x256xf32> to vector<4x256xf32>
    %35 = arith.mulf %1, %34 : vector<4x256xf32>
    %36 = vector.shape_cast %15 : vector<4x256xf32> to vector<1x4x256xf32>
    %cst_20 = arith.constant dense<0.000000e+00> : vector<1xf32>
    %37 = vector.multi_reduction <add>, %36, %cst_20 [1, 2] : vector<1x4x256xf32> to vector<1xf32>
    %38 = vector.shape_cast %37 : vector<1xf32> to vector<1x1x1xf32>
    %39 = vector.extract %38[0, 0, 0] : f32 from vector<1x1x1xf32>
    %40 = vector.broadcast %39 : f32 to vector<1x128xf32>
    %41 = vector.shape_cast %23 : vector<4x256xf32> to vector<1x4x256xf32>
    %cst_21 = arith.constant dense<0.000000e+00> : vector<1xf32>
    %42 = vector.multi_reduction <add>, %41, %cst_21 [1, 2] : vector<1x4x256xf32> to vector<1xf32>
    %43 = vector.shape_cast %42 : vector<1xf32> to vector<1x1x1xf32>
    %44 = vector.extract %43[0, 0, 0] : f32 from vector<1x1x1xf32>
    %45 = vector.broadcast %44 : f32 to vector<1x128xf32>
    %46 = vector.shape_cast %1 : vector<4x256xf32> to vector<1x4x256xf32>
    %cst_22 = arith.constant dense<0.000000e+00> : vector<1xf32>
    %47 = vector.multi_reduction <add>, %46, %cst_22 [1, 2] : vector<1x4x256xf32> to vector<1xf32>
    %48 = vector.shape_cast %47 : vector<1xf32> to vector<1x1x1xf32>
    %49 = vector.extract %48[0, 0, 0] : f32 from vector<1x1x1xf32>
    %50 = vector.broadcast %49 : f32 to vector<1x128xf32>
    %51 = vector.shape_cast %2 : vector<4x256xf32> to vector<1x4x256xf32>
    %cst_23 = arith.constant dense<0.000000e+00> : vector<1xf32>
    %52 = vector.multi_reduction <add>, %51, %cst_23 [1, 2] : vector<1x4x256xf32> to vector<1xf32>
    %53 = vector.shape_cast %52 : vector<1xf32> to vector<1x1x1xf32>
    %54 = vector.extract %53[0, 0, 0] : f32 from vector<1x1x1xf32>
    %55 = vector.broadcast %54 : f32 to vector<1x128xf32>
    %56 = vector.shape_cast %35 : vector<4x256xf32> to vector<1x4x256xf32>
    %cst_24 = arith.constant dense<0.000000e+00> : vector<1xf32>
    %57 = vector.multi_reduction <add>, %56, %cst_24 [1, 2] : vector<1x4x256xf32> to vector<1xf32>
    %58 = vector.shape_cast %57 : vector<1xf32> to vector<1x1x1xf32>
    %59 = vector.extract %58[0, 0, 0] : f32 from vector<1x1x1xf32>
    %60 = vector.broadcast %59 : f32 to vector<1x128xf32>
    %61 = tpu.concatenate %40, %45, %50, %55, %60 in 0 : vector<1x128xf32>, vector<1x128xf32>, vector<1x128xf32>, vector<1x128xf32>, vector<1x128xf32> -> vector<5x128xf32>
    %c0_25 = arith.constant 0 : index
    %c0_26 = arith.constant 0 : index
    %c0_27 = arith.constant 0 : index
    %62 = vector.load %arg6[%c0_25, %c0_26, %c0_27] : memref<1x5x128xf32, #tpu.memory_space<vmem>>, vector<1x5x128xf32>
    %63 = vector.shape_cast %62 : vector<1x5x128xf32> to vector<5x128xf32>
    %64 = vector.shape_cast %61 : vector<5x128xf32> to vector<1x5x128xf32>
    tpu.vector_store %arg6[%c0_25, %c0_26, %c0_27], %64 {strides = array<i32>} : memref<1x5x128xf32, #tpu.memory_space<vmem>>, vector<1x5x128xf32>,
    return
  }
  func.func @transform_0(%arg0: i32) -> (i32, i32) {
    %c0_i32 = arith.constant 0 : i32
    %c0_i32_0 = arith.constant 0 : i32
    return %c0_i32, %arg0 : i32, i32
  }
  func.func @transform_1(%arg0: i32) -> (i32, i32) {
    %c0_i32 = arith.constant 0 : i32
    %c0_i32_0 = arith.constant 0 : i32
    return %c0_i32, %arg0 : i32, i32
  }
  func.func @transform_2(%arg0: i32) -> (i32, i32) {
    %c0_i32 = arith.constant 0 : i32
    %c0_i32_0 = arith.constant 0 : i32
    return %c0_i32, %arg0 : i32, i32
  }
  func.func @transform_3(%arg0: i32) -> (i32, i32, i32) {
    %c0_i32 = arith.constant 0 : i32
    %c0_i32_0 = arith.constant 0 : i32
    %c0_i32_1 = arith.constant 0 : i32
    return %c0_i32, %c0_i32_0, %arg0 : i32, i32, i32
  }
  func.func @transform_4(%arg0: i32) -> (i32, i32, i32) {
    %c0_i32 = arith.constant 0 : i32
    %c0_i32_0 = arith.constant 0 : i32
    %c0_i32_1 = arith.constant 0 : i32
    return %c0_i32, %c0_i32_0, %arg0 : i32, i32, i32
  }
  func.func @transform_5(%arg0: i32) -> (i32, i32, i32) {
    %c0_i32 = arith.constant 0 : i32
    %c0_i32_0 = arith.constant 0 : i32
    %c0_i32_1 = arith.constant 0 : i32
    return %arg0, %c0_i32, %c0_i32_0 : i32, i32, i32
  }
}

</mosaic_0001>

<llo_original>
// kernel: voxel_loss.1
$region0: #{voxel_loss.1}
  #allocation0 [shape = 'u32[]', space=smem, size = 0x4, offset = 0x4, fixed_abs, tag = 'smem constant byte address 0x4 - core index']
  #allocation1 [shape = 'u32[72,128]{1,0:T(1,128)}', space=vmem, size = 0x9000, scoped, tag = 'internal scratch']
  %s0 = inlined_call_operand.vmem [shape: f32[4,256], index: 0, kind: input, shape index: {}]
  %s1 = inlined_call_operand.vmem [shape: f32[4,256], index: 1, kind: input, shape index: {}]
  %s2 = inlined_call_operand.vmem [shape: f32[4,256], index: 2, kind: input, shape index: {}]
  %s3 = inlined_call_operand.vmem [shape: f32[4,7,256], index: 3, kind: input, shape index: {}]
  %s4 = inlined_call_operand.vmem [shape: f32[4,7,256], index: 4, kind: input, shape index: {}]
  %s5 = inlined_call_operand.vmem [shape: f32[1,5,128], index: 5, kind: output, shape index: {}]
  %s6 = sld [smem:[#allocation0]]
  $region30: #{voxel_loss.1} parent=0
    _
  %s8 = ssub.s32 1, %s6
  %s9 = scalar_select 0, %s8, %s6
  // Predicated region
  $region2: #{voxel_loss.1} parent=0 // pred_check
    _
  $region3: #{voxel_loss.1} parent=0 // pred_check_branch
    %11 = sbr.rel (0) target = $region5
  $region4: #{voxel_loss.1} parent=0 // pred_region
    _
  $region5: #{voxel_loss.1} parent=0 // pred_fallthru
    _
  // Predicated region
  $region6: #{voxel_loss.1} parent=0 // pred_check
    _
  $region7: #{voxel_loss.1} parent=0 // pred_check_branch
    %13 = sbr.rel (0) target = $region9
  $region8: #{voxel_loss.1} parent=0 // pred_region
    _
  $region9: #{voxel_loss.1} parent=0 // pred_fallthru
    _
  // Predicated region
  $region10: #{voxel_loss.1} parent=0 // pred_check
    _
  $region11: #{voxel_loss.1} parent=0 // pred_check_branch
    %15 = sbr.rel (0) target = $region13
  $region12: #{voxel_loss.1} parent=0 // pred_region
    _
  $region13: #{voxel_loss.1} parent=0 // pred_fallthru
    _
  // Predicated region
  $region14: #{voxel_loss.1} parent=0 // pred_check
    _
  $region15: #{voxel_loss.1} parent=0 // pred_check_branch
    %17 = sbr.rel (0) target = $region17
  $region16: #{voxel_loss.1} parent=0 // pred_region
    _
  $region17: #{voxel_loss.1} parent=0 // pred_fallthru
    _
  // Predicated region
  $region18: #{voxel_loss.1} parent=0 // pred_check
    _
  $region19: #{voxel_loss.1} parent=0 // pred_check_branch
    %19 = sbr.rel (0) target = $region21
  $region20: #{voxel_loss.1} parent=0 // pred_region
    _
  $region21: #{voxel_loss.1} parent=0 // pred_fallthru
    _
  %v20 = vld [vmem:[%s0] sm:$0xff]
  %v21 = vld [vmem:[%s1] sm:$0xff]
  %v22 = vld [vmem:[%s2] sm:$0xff]
  %v23 = vld [vmem:[%s3] sm:$0x7f]
  %v24 = vld [vmem:[%s3 + $0x8] sm:$0x7f]
  %v25 = vld [vmem:[%s3 + $0x10] sm:$0x7f]
  %v26 = vld [vmem:[%s3 + $0x18] sm:$0x7f]
  %v27 = vld [vmem:[%s3 + $0x20] sm:$0x7f]
  %v28 = vld [vmem:[%s3 + $0x28] sm:$0x7f]
  %v29 = vld [vmem:[%s3 + $0x30] sm:$0x7f]
  %v30 = vld [vmem:[%s3 + $0x38] sm:$0x7f]
  %v31 = vld [vmem:[%s4] sm:$0x7f]
  %v32 = vld [vmem:[%s4 + $0x8] sm:$0x7f]
  %v33 = vld [vmem:[%s4 + $0x10] sm:$0x7f]
  %v34 = vld [vmem:[%s4 + $0x18] sm:$0x7f]
  %v35 = vld [vmem:[%s4 + $0x20] sm:$0x7f]
  %v36 = vld [vmem:[%s4 + $0x28] sm:$0x7f]
  %v37 = vld [vmem:[%s4 + $0x30] sm:$0x7f]
  %v38 = vld [vmem:[%s4 + $0x38] sm:$0x7f]
  %v39 = vxor.u32 %v20, 2147483648
  %v40 = vmul.f32 %v39, 1.442695
  %v41 = vpow.pop %v40
  %v42 = vadd.f32 %v41, 1.0
  %v43 = vrcp.pop %v42
  %v44 = vmul.f32 %v42, %v43
  %v45 = vsub.f32 1.0, %v44
  %v46 = vmul.f32 %v43, %v45
  %v47 = vadd.f32 %v43, %v46
  %vm48 = vweird.f32 %v42
  %vm49 = vweird.f32 %v43
  %vm50 = vmor %vm48, %vm49
  %v51 = vsel %vm50, %v43, %v47
  %v52 = vand.u32 2147483647, %v42
  %vm53 = vcmp.eq.f32.partialorder %v52, 8.507059e+37
  %v54 = vand.u32 %v42, 2147483648
  %v55 = vor.u32 1.1754944e-38, %v54
  %v56 = vsel %vm53, %v55, %v51
  %v57 = vmul.f32 1.0, %v56
  %v58 = vsub.f32 0.0, %v21
  %v59 = vadd.f32 %v57, 1e-06
  %v60 = vlog2.pop %v59
  %v61 = vmul.f32 %v60, 0.6931472
  %v62 = vmul.f32 %v58, %v61
  %v63 = vsub.f32 0.0, %v22
  %v64 = vsub.f32 1.0, %v57
  %v65 = vadd.f32 %v64, 1e-06
  %v66 = vlog2.pop %v65
  %v67 = vmul.f32 %v66, 0.6931472
  %v68 = vmul.f32 %v63, %v67
  %v69 = vsub.f32 %v23, %v31
  %v70 = vsub.f32 %v24, %v32
  %v71 = vsub.f32 %v25, %v33
  %v72 = vsub.f32 %v26, %v34
  %v73 = vsub.f32 %v27, %v35
  %v74 = vsub.f32 %v28, %v36
  %v75 = vsub.f32 %v29, %v37
  %v76 = vsub.f32 %v30, %v38
  %v77 = vand.u32 2147483647, %v69
  %v78 = vand.u32 2147483647, %v70
  %v79 = vand.u32 2147483647, %v71
  %v80 = vand.u32 2147483647, %v72
  %v81 = vand.u32 2147483647, %v73
  %v82 = vand.u32 2147483647, %v74
  %v83 = vand.u32 2147483647, %v75
  %v84 = vand.u32 2147483647, %v76
  %vm85 = vcmp.lt.f32.partialorder %v77, 1.0
  %vm86 = vcmp.lt.f32.partialorder %v78, 1.0
  %vm87 = vcmp.lt.f32.partialorder %v79, 1.0
  %vm88 = vcmp.lt.f32.partialorder %v80, 1.0
  %vm89 = vcmp.lt.f32.partialorder %v81, 1.0
  %vm90 = vcmp.lt.f32.partialorder %v82, 1.0
  %vm91 = vcmp.lt.f32.partialorder %v83, 1.0
  %vm92 = vcmp.lt.f32.partialorder %v84, 1.0
  %v93 = vmul.f32 %v69, 0.5
  %v94 = vmul.f32 %v70, 0.5
  %v95 = vmul.f32 %v71, 0.5
  %v96 = vmul.f32 %v72, 0.5
  %v97 = vmul.f32 %v73, 0.5
  %v98 = vmul.f32 %v74, 0.5
  %v99 = vmul.f32 %v75, 0.5
  %v100 = vmul.f32 %v76, 0.5
  %v101 = vmul.f32 %v93, %v69
  %v102 = vmul.f32 %v94, %v70
  %v103 = vmul.f32 %v95, %v71
  %v104 = vmul.f32 %v96, %v72
  %v105 = vmul.f32 %v97, %v73
  %v106 = vmul.f32 %v98, %v74
  %v107 = vmul.f32 %v99, %v75
  %v108 = vmul.f32 %v100, %v76
  %v109 = vsub.f32 %v77, 0.5
  %v110 = vsub.f32 %v78, 0.5
  %v111 = vsub.f32 %v79, 0.5
  %v112 = vsub.f32 %v80, 0.5
  %v113 = vsub.f32 %v81, 0.5
  %v114 = vsub.f32 %v82, 0.5
  %v115 = vsub.f32 %v83, 0.5
  %v116 = vsub.f32 %v84, 0.5
  %v117 = vsel %vm85, %v101, %v109
  %v118 = vsel %vm86, %v102, %v110
  %v119 = vsel %vm87, %v103, %v111
  %v120 = vsel %vm88, %v104, %v112
  %v121 = vsel %vm89, %v105, %v113
  %v122 = vsel %vm90, %v106, %v114
  %v123 = vsel %vm91, %v107, %v115
  %v124 = vsel %vm92, %v108, %v116
  %vm125 = vcmask 1046528
  %v126 = vsel %vm125, %v117, 0.0
  %v127 = vrot.slane %v126, 4
  %v128 = vadd.f32 %v126, %v127
  %v129 = vrot.slane %v128, 2
  %v130 = vadd.f32 %v128, %v129
  %v131 = vrot.slane %v130, 1
  %v132 = vadd.f32 %v130, %v131
  %v133 = vsel %vm125, %v118, 0.0
  %v134 = vrot.slane %v133, 4
  %v135 = vadd.f32 %v133, %v134
  %v136 = vrot.slane %v135, 2
  %v137 = vadd.f32 %v135, %v136
  %v138 = vrot.slane %v137, 1
  %v139 = vadd.f32 %v137, %v138
  %v140 = vsel %vm125, %v119, 0.0
  %v141 = vrot.slane %v140, 4
  %v142 = vadd.f32 %v140, %v141
  %v143 = vrot.slane %v142, 2
  %v144 = vadd.f32 %v142, %v143
  %v145 = vrot.slane %v144, 1
  %v146 = vadd.f32 %v144, %v145
  %v147 = vsel %vm125, %v120, 0.0
  %v148 = vrot.slane %v147, 4
  %v149 = vadd.f32 %v147, %v148
  %v150 = vrot.slane %v149, 2
  %v151 = vadd.f32 %v149, %v150
  %v152 = vrot.slane %v151, 1
  %v153 = vadd.f32 %v151, %v152
  %v154 = vsel %vm125, %v121, 0.0
  %v155 = vrot.slane %v154, 4
  %v156 = vadd.f32 %v154, %v155
  %v157 = vrot.slane %v156, 2
  %v158 = vadd.f32 %v156, %v157
  %v159 = vrot.slane %v158, 1
  %v160 = vadd.f32 %v158, %v159
  %v161 = vsel %vm125, %v122, 0.0
  %v162 = vrot.slane %v161, 4
  %v163 = vadd.f32 %v161, %v162
  %v164 = vrot.slane %v163, 2
  %v165 = vadd.f32 %v163, %v164
  %v166 = vrot.slane %v165, 1
  %v167 = vadd.f32 %v165, %v166
  %v168 = vsel %vm125, %v123, 0.0
  %v169 = vrot.slane %v168, 4
  %v170 = vadd.f32 %v168, %v169
  %v171 = vrot.slane %v170, 2
  %v172 = vadd.f32 %v170, %v171
  %v173 = vrot.slane %v172, 1
  %v174 = vadd.f32 %v172, %v173
  %v175 = vsel %vm125, %v124, 0.0
  %v176 = vrot.slane %v175, 4
  %v177 = vadd.f32 %v175, %v176
  %v178 = vrot.slane %v177, 2
  %v179 = vadd.f32 %v177, %v178
  %v180 = vrot.slane %v179, 1
  %v181 = vadd.f32 %v179, %v180
  %v190 = vrot.slane %v139, 4
  %v191 = vrot.slane %v153, 4
  %v192 = vrot.slane %v167, 4
  %v193 = vrot.slane %v181, 4
  %vm194 = vcmask 1043456
  %v195 = vsel %vm194, %v132, %v190
  %v196 = vsel %vm194, %v146, %v191
  %v197 = vsel %vm194, %v160, %v192
  %v198 = vsel %vm194, %v174, %v193
  %v199 = vrot.slane %v196, 7
  %vm200 = vcmask 1041409
  %v201 = vsel %vm200, %v199, %v195
  %vm202 = vcmask 1045509
  %v203 = vsel %vm202, %v199, %v201
  %v204 = vrot.slane %v197, 6
  %vm205 = vcmask 1042434
  %v206 = vsel %vm205, %v204, %v203
  %vm207 = vcmask 1046534
  %v208 = vsel %vm207, %v204, %v206
  %v209 = vrot.slane %v198, 5
  %vm210 = vcmask 1043459
  %v211 = vsel %vm210, %v209, %v208
  %vm212 = vcmask 1047559
  %v213 = vsel %vm212, %v209, %v211
  %v215 = vmul.f32 %v21, %v213
  %217 = vst [vmem:[#allocation1] ss:$2 sm:$0xff] %v62
  %v218 = vld.sshfl [vmem:[#allocation1] sm:$0xff pattern:$0x75316420]
  %v219 = vld.sshfl [vmem:[#allocation1 + $0x8] sm:$0xff pattern:$0x75316420]
  %v222 = vsel %vm194, %v218, 0.0
  %v223 = vsel %vm194, %v219, 0.0
  %v224 = vadd.f32 %v222, %v223
  %225 = vadd.xlane.f32.xlu0 %v224
  %v226 = vpop.xlane.xlu0 %225
  %v227 = vrot.slane %v226, 4
  %v228 = vadd.f32 %v226, %v227
  %v229 = vrot.slane %v228, 2
  %v230 = vadd.f32 %v228, %v229
  %v231 = vrot.slane %v230, 1
  %v232 = vadd.f32 %v230, %v231
  %s233 = vtos %v232
  %v234 = vstv %s233
  %236 = vst [vmem:[#allocation1] ss:$2 sm:$0xff] %v68
  %v237 = vld.sshfl [vmem:[#allocation1] sm:$0xff pattern:$0x75316420]
  %v238 = vld.sshfl [vmem:[#allocation1 + $0x8] sm:$0xff pattern:$0x75316420]
  %v241 = vsel %vm194, %v237, 0.0
  %v242 = vsel %vm194, %v238, 0.0
  %v243 = vadd.f32 %v241, %v242
  %244 = vadd.xlane.f32.xlu0 %v243
  %v245 = vpop.xlane.xlu0 %244
  %v246 = vrot.slane %v245, 4
  %v247 = vadd.f32 %v245, %v246
  %v248 = vrot.slane %v247, 2
  %v249 = vadd.f32 %v247, %v248
  %v250 = vrot.slane %v249, 1
  %v251 = vadd.f32 %v249, %v250
  %s252 = vtos %v251
  %v253 = vstv %s252
  %255 = vst [vmem:[#allocation1] ss:$2 sm:$0xff] %v21
  %v256 = vld.sshfl [vmem:[#allocation1] sm:$0xff pattern:$0x75316420]
  %v257 = vld.sshfl [vmem:[#allocation1 + $0x8] sm:$0xff pattern:$0x75316420]
  %v260 = vsel %vm194, %v256, 0.0
  %v261 = vsel %vm194, %v257, 0.0
  %v262 = vadd.f32 %v260, %v261
  %263 = vadd.xlane.f32.xlu0 %v262
  %v264 = vpop.xlane.xlu0 %263
  %v265 = vrot.slane %v264, 4
  %v266 = vadd.f32 %v264, %v265
  %v267 = vrot.slane %v266, 2
  %v268 = vadd.f32 %v266, %v267
  %v269 = vrot.slane %v268, 1
  %v270 = vadd.f32 %v268, %v269
  %s271 = vtos %v270
  %v272 = vstv %s271
  %274 = vst [vmem:[#allocation1] ss:$2 sm:$0xff] %v22
  %v275 = vld.sshfl [vmem:[#allocation1] sm:$0xff pattern:$0x75316420]
  %v276 = vld.sshfl [vmem:[#allocation1 + $0x8] sm:$0xff pattern:$0x75316420]
  %v279 = vsel %vm194, %v275, 0.0
  %v280 = vsel %vm194, %v276, 0.0
  %v281 = vadd.f32 %v279, %v280
  %282 = vadd.xlane.f32.xlu0 %v281
  %v283 = vpop.xlane.xlu0 %282
  %v284 = vrot.slane %v283, 4
  %v285 = vadd.f32 %v283, %v284
  %v286 = vrot.slane %v285, 2
  %v287 = vadd.f32 %v285, %v286
  %v288 = vrot.slane %v287, 1
  %v289 = vadd.f32 %v287, %v288
  %s290 = vtos %v289
  %v291 = vstv %s290
  %293 = vst [vmem:[#allocation1] ss:$2 sm:$0xff] %v215
  %v294 = vld.sshfl [vmem:[#allocation1] sm:$0xff pattern:$0x75316420]
  %v295 = vld.sshfl [vmem:[#allocation1 + $0x8] sm:$0xff pattern:$0x75316420]
  %v298 = vsel %vm194, %v294, 0.0
  %v299 = vsel %vm194, %v295, 0.0
  %v300 = vadd.f32 %v298, %v299
  %301 = vadd.xlane.f32.xlu0 %v300
  %v302 = vpop.xlane.xlu0 %301
  %v303 = vrot.slane %v302, 4
  %v304 = vadd.f32 %v302, %v303
  %v305 = vrot.slane %v304, 2
  %v306 = vadd.f32 %v304, %v305
  %v307 = vrot.slane %v306, 1
  %v308 = vadd.f32 %v306, %v307
  %s309 = vtos %v308
  %v310 = vstv %s309
  %vm311 = vcmask 1040384
  %v312 = vsel %vm311, %v234, %v253
  %vm313 = vcmask 1041408
  %v314 = vsel %vm313, %v312, %v272
  %vm315 = vcmask 1042432
  %v316 = vsel %vm315, %v314, %v291
  %v317 = vsel %vm194, %v316, %v310
  %318 = vst [vmem:[%s5] sm:$0x1f] %v317
  // Predicated region
  $region22: #{voxel_loss.1} parent=0 // pred_check
    _
  $region23: #{voxel_loss.1} parent=0 // pred_check_branch
    %320 = sbr.rel (0) target = $region25
  $region24: #{voxel_loss.1} parent=0 // pred_region
    _
  $region25: #{voxel_loss.1} parent=0 // pred_fallthru
    _
  // Predicated region
  $region26: #{voxel_loss.1} parent=0 // pred_check
    _
  $region27: #{voxel_loss.1} parent=0 // pred_check_branch
    %322 = sbr.rel (0) target = $region29
  $region28: #{voxel_loss.1} parent=0 // pred_region
    _
  $region29: #{voxel_loss.1} parent=0 // pred_fallthru
    _

</llo_original>
